<compile_context>
chip_gen: v6e
topology: v6e:2x2x1
jax: 0.10.0
libtpu: 0.0.40
codegen_flags: <defaults>
</compile_context>

<pallas_src>
import functools

import jax
import jax.numpy as jnp
from jax.experimental import pallas as pl
from jax.experimental.pallas import tpu as pltpu

LANE = 128
SUBLANE = 8
# Max lane-padded f32 elements per input block: 512K elems = 2 MiB; with two
# inputs double-buffered this is ~8 MiB VMEM -> safe on every generation.
MAX_BLOCK_ELEMS = 512 * 1024
PAD_LOGIT = -1.0e4   # sigmoid(PAD)=0 and bce(PAD, t=0)=0 -> masked rows add 0


def _round_up(a, b):
    return (a + b - 1) // b * b


def _round_down(a, b):
    return a // b * b


def _num_tensorcores():
    """Best-effort TensorCore-per-chip count (2 on v7x-class chips, else 1)."""
    try:
        dev = jax.devices()[0]
        ncores = getattr(dev, "num_cores", None)
        if ncores:
            return int(ncores)
        if "v7" in str(getattr(dev, "device_kind", "")).lower():
            return 2
    except Exception:
        pass
    return 1


def _loss_kernel(x_ref, t_ref, out_ref, acc_inter, acc_union, acc_bce, *,
                 inner, num_blocks, mask_rows, exact_cover):
    p = pl.program_id(0)
    i = pl.program_id(1)
    g = p * inner + i                      # global block index
    last = num_blocks - 1

    @pl.when(i == 0)
    def _init():
        acc_inter[...] = jnp.zeros_like(acc_inter)
        acc_union[...] = jnp.zeros_like(acc_union)
        acc_bce[...] = jnp.zeros_like(acc_bce)

    def accumulate(x, t):
        # Shared transcendental: e = exp(-|x|) feeds both sigmoid and BCE.
        e = jnp.exp(-jnp.abs(x))
        r = 1.0 / (1.0 + e)                # exact; pl.reciprocal(approx=True)
        s = jnp.where(x >= 0.0, r, e * r)  # would drift ~2^-12 vs the torch ref
        # Stable BCE-with-logits (matches torch.nn.BCEWithLogitsLoss):
        #   max(x, 0) - x*t + log1p(exp(-|x|))
        bce = jnp.maximum(x, 0.0) - x * t + jnp.log1p(e)
        rows, w = x.shape
        grp = rows // SUBLANE
        # VPU-only accumulation into (8, W) partials; the reshape only splits
        # the sublane-major dim, so it is layout-free.
        acc_inter[...] += jnp.sum((s * t).reshape(grp, SUBLANE, w), axis=0)
        acc_union[...] += jnp.sum((s + t).reshape(grp, SUBLANE, w), axis=0)
        acc_bce[...] += jnp.sum(bce.reshape(grp, SUBLANE, w), axis=0)

    x = x_ref[...].astype(jnp.float32)     # in-VMEM cast (no extra HBM pass)
    t = t_ref[...].astype(jnp.float32)

    if mask_rows == 0 and exact_cover:
        accumulate(x, t)
    elif mask_rows == 0:
        @pl.when(g <= last)                # skip clamped duplicate steps
        def _full():
            accumulate(x, t)
    else:
        @pl.when(g < last)
        def _full():
            accumulate(x, t)

        @pl.when(g == last)
        def _tail():
            # Ragged tail: mask out-of-range rows BEFORE any arithmetic so
            # the partial-DMA garbage never enters exp/log (and adds 0).
            rid = jax.lax.broadcasted_iota(jnp.int32, x.shape, 0)
            valid = rid < mask_rows
            accumulate(jnp.where(valid, x, PAD_LOGIT),
                       jnp.where(valid, t, 0.0))

    @pl.when(i == pl.num_programs(1) - 1)
    def _finalize():
        # One cross-lane (XLU) reduction per quantity, per core slice.
        out_ref[0, 0] = jnp.sum(acc_inter[...])
        out_ref[0, 1] = jnp.sum(acc_union[...])
        out_ref[0, 2] = jnp.sum(acc_bce[...])


def pallas_loss(logits, targets, *, smooth=1e-6, alpha=0.5, beta=0.5,
                max_block_elems=MAX_BLOCK_ELEMS, nsplit=None):
    assert logits.shape == targets.shape
    n = logits.size

    def coerce(a):
        if a.dtype in (jnp.float32, jnp.bfloat16, jnp.float16):
            return a
        return a.astype(jnp.float32)       # only exotic dtypes (bool/int/f64)

    x, t = coerce(logits), coerce(targets)
    total = n

    # Free (bitcast) 2-D lane-dense view: no jnp.pad, no extra HBM pass.
    if n % LANE == 0:
        width = LANE
    else:
        width = int(logits.shape[-1]) if logits.ndim >= 2 else 0
        if not (0 < width
                and _round_up(width, LANE) * SUBLANE <= max_block_elems):
            # Degenerate shapes only (e.g. huge odd-length 1-D): pad fallback.
            pad = _round_up(n, LANE) - n
            x = jnp.pad(x.reshape(-1), (0, pad), constant_values=PAD_LOGIT)
            t = jnp.pad(t.reshape(-1), (0, pad), constant_values=0)
            width, total = LANE, n + pad

    rows = total // width
    x2 = x.reshape(rows, width)
    t2 = t.reshape(rows, width)

    # Largest row tile whose lane-padded VMEM footprint stays under budget.
    w_pad = _round_up(width, LANE)
    tile_r = max(SUBLANE, _round_down(max_block_elems // w_pad, SUBLANE))
    tile_r = min(tile_r, _round_up(rows, SUBLANE))
    num_blocks = pl.cdiv(rows, tile_r)
    mask_rows = 0 if rows % tile_r == 0 else rows - (num_blocks - 1) * tile_r

    if nsplit is None:
        nsplit = 2 if (_num_tensorcores() >= 2 and num_blocks >= 8) else 1
    nsplit = max(1, min(int(nsplit), num_blocks))
    inner = pl.cdiv(num_blocks, nsplit)
    exact_cover = (nsplit * inner == num_blocks)

    if exact_cover:
        row_idx = lambda p, i: (p * inner + i, 0)
    else:
        # Clamp duplicate trailing steps onto the last block: their DMA stays
        # in bounds and the kernel skips their accumulation.
        row_idx = lambda p, i: (jnp.minimum(p * inner + i, num_blocks - 1), 0)

    kernel = functools.partial(
        _loss_kernel, inner=inner, num_blocks=num_blocks,
        mask_rows=mask_rows, exact_cover=exact_cover)

    bytes_in = x2.size * x2.dtype.itemsize + t2.size * t2.dtype.itemsize
    cost = pl.CostEstimate(flops=14 * n, transcendentals=2 * n,
                           bytes_accessed=bytes_in + 12 * nsplit)

    partials = pl.pallas_call(
        kernel,
        out_shape=jax.ShapeDtypeStruct((nsplit, 3), jnp.float32),
        grid_spec=pltpu.PrefetchScalarGridSpec(
            num_scalar_prefetch=0,
            grid=(nsplit, inner),
            in_specs=[
                pl.BlockSpec((tile_r, width), row_idx),
                pl.BlockSpec((tile_r, width), row_idx),
            ],
            out_specs=pl.BlockSpec((1, 3), lambda p, i: (p, 0),
                                   memory_space=pltpu.MemorySpace.SMEM),
            scratch_shapes=[
                pltpu.VMEM((SUBLANE, width), jnp.float32),  # sum(sigmoid(x)*t)
                pltpu.VMEM((SUBLANE, width), jnp.float32),  # sum(sigmoid(x)+t)
                pltpu.VMEM((SUBLANE, width), jnp.float32),  # sum(per-elem bce)
            ],
        ),
        compiler_params=pltpu.CompilerParams(
            # TODO(synk): on v7x verify "parallel" shards the leading axis
            # across both TensorCores; otherwise switch it to CORE_PARALLEL.
            dimension_semantics=("parallel", "arbitrary")),
        cost_estimate=cost,
    )(x2, t2)

    # Trivial scalar epilogue in XLA: combine per-slice partial sums.
    inter = jnp.sum(partials[:, 0])
    union = jnp.sum(partials[:, 1])
    bce_mean = jnp.sum(partials[:, 2]) / n
    dice = (2.0 * inter + smooth) / (union + smooth)
    return alpha * (1.0 - dice) + beta * bce_mean


def _reference_loss(logits, targets, *, smooth=1e-6, alpha=0.5, beta=0.5):
    x = logits.reshape(-1).astype(jnp.float32)
    t = targets.reshape(-1).astype(jnp.float32)
    s = jax.nn.sigmoid(x)
    inter = jnp.sum(s * t)
    union = jnp.sum(s) + jnp.sum(t)
    dice = (2.0 * inter + smooth) / (union + smooth)
    bce = jnp.mean(jnp.maximum(x, 0.0) - x * t + jnp.log1p(jnp.exp(-jnp.abs(x))))
    return alpha * (1.0 - dice) + beta * bce


if __name__ == "__main__":
    key = jax.random.PRNGKey(0)

    # Small NCHW-like segmentation shapes (second one exercises an odd last
    # dim -> non-128-divisible flat length -> in-kernel tail masking).
    for shape in [(2, 4, 16, 16), (2, 3, 17, 19)]:
        key, k1, k2 = jax.random.split(key, 3)
        logits = jax.random.normal(k1, shape, dtype=jnp.float32)
        targets = (jax.random.uniform(k2, shape) > 0.5).astype(jnp.float32)
        ref = _reference_loss(logits, targets)

        # Default (large-tile) path.
        loss = jax.block_until_ready(pallas_loss(logits, targets))
        assert jnp.allclose(loss, ref, atol=2e-5, rtol=2e-5), (shape, loss, ref)

        # Tiny tiles -> multi-step grid + ragged-tail mask + 2-way split path.
        loss2 = jax.block_until_ready(
            pallas_loss(logits, targets, max_block_elems=1024, nsplit=2))
        assert jnp.allclose(loss2, ref, atol=2e-5, rtol=2e-5), (shape, loss2, ref)

    print("KERNEL_OK")
</pallas_src>

<mosaic_0001>
module attributes {stable_mosaic.version = 11 : i64} {
  func.func @_loss_kernel(%arg0: i32, %arg1: i32, %arg2: memref<16x128xf32, #tpu.memory_space<vmem>>, %arg3: memref<16x128xf32, #tpu.memory_space<vmem>>, %arg4: memref<1x3xf32, #tpu.memory_space<smem>>, %arg5: memref<8x128xf32, #tpu.memory_space<vmem>>, %arg6: memref<8x128xf32, #tpu.memory_space<vmem>>, %arg7: memref<8x128xf32, #tpu.memory_space<vmem>>) attributes {dimension_semantics = [#tpu.dimension_semantics<parallel>, #tpu.dimension_semantics<arbitrary>], iteration_bounds = array<i64: 1, 1>, scalar_prefetch = 0 : i64, scratch_operands = 3 : i64, tpu.core_type = #tpu.core_type<tc>, window_params = [{transform_indices = @transform_0, window_bounds = array<i64: 16, 128>}, {transform_indices = @transform_1, window_bounds = array<i64: 16, 128>}, {transform_indices = @transform_2, window_bounds = array<i64: 1, 3>}]} {
    %c0_i32 = arith.constant 0 : i32
    %0 = arith.cmpi eq, %arg1, %c0_i32 : i32
    %1 = arith.extui %0 : i1 to i32
    %c0_i32_0 = arith.constant 0 : i32
    %2 = arith.cmpi ne, %1, %c0_i32_0 : i32
    scf.if %2 {
      %cst_25 = arith.constant 0.000000e+00 : f32
      %43 = vector.broadcast %cst_25 : f32 to vector<8x128xf32>
      %c0_26 = arith.constant 0 : index
      %c0_27 = arith.constant 0 : index
      %44 = vector.load %arg5[%c0_26, %c0_27] : memref<8x128xf32, #tpu.memory_space<vmem>>, vector<8x128xf32>
      tpu.vector_store %arg5[%c0_26, %c0_27], %43 {strides = array<i32>} : memref<8x128xf32, #tpu.memory_space<vmem>>, vector<8x128xf32>,
      %cst_28 = arith.constant 0.000000e+00 : f32
      %45 = vector.broadcast %cst_28 : f32 to vector<8x128xf32>
      %c0_29 = arith.constant 0 : index
      %c0_30 = arith.constant 0 : index
      %46 = vector.load %arg6[%c0_29, %c0_30] : memref<8x128xf32, #tpu.memory_space<vmem>>, vector<8x128xf32>
      tpu.vector_store %arg6[%c0_29, %c0_30], %45 {strides = array<i32>} : memref<8x128xf32, #tpu.memory_space<vmem>>, vector<8x128xf32>,
      %cst_31 = arith.constant 0.000000e+00 : f32
      %47 = vector.broadcast %cst_31 : f32 to vector<8x128xf32>
      %c0_32 = arith.constant 0 : index
      %c0_33 = arith.constant 0 : index
      %48 = vector.load %arg7[%c0_32, %c0_33] : memref<8x128xf32, #tpu.memory_space<vmem>>, vector<8x128xf32>
      tpu.vector_store %arg7[%c0_32, %c0_33], %47 {strides = array<i32>} : memref<8x128xf32, #tpu.memory_space<vmem>>, vector<8x128xf32>,
    } else {
    }
    %c0 = arith.constant 0 : index
    %c0_1 = arith.constant 0 : index
    %3 = vector.load %arg2[%c0, %c0_1] : memref<16x128xf32, #tpu.memory_space<vmem>>, vector<16x128xf32>
    %c0_2 = arith.constant 0 : index
    %c0_3 = arith.constant 0 : index
    %4 = vector.load %arg3[%c0_2, %c0_3] : memref<16x128xf32, #tpu.memory_space<vmem>>, vector<16x128xf32>
    %5 = math.absf %3 : vector<16x128xf32>
    %cst = arith.constant 0.000000e+00 : f32
    %6 = vector.broadcast %cst : f32 to vector<16x128xf32>
    %7 = arith.subf %6, %5 : vector<16x128xf32>
    %8 = math.exp %7 : vector<16x128xf32>
    %cst_4 = arith.constant 1.000000e+00 : f32
    %9 = vector.broadcast %cst_4 : f32 to vector<16x128xf32>
    %10 = arith.addf %9, %8 : vector<16x128xf32>
    %cst_5 = arith.constant 1.000000e+00 : f32
    %11 = vector.broadcast %cst_5 : f32 to vector<16x128xf32>
    %12 = arith.divf %11, %10 : vector<16x128xf32>
    %cst_6 = arith.constant 0.000000e+00 : f32
    %13 = vector.broadcast %cst_6 : f32 to vector<16x128xf32>
    %14 = arith.cmpf oge, %3, %13 : vector<16x128xf32>
    %15 = arith.mulf %8, %12 : vector<16x128xf32>
    %16 = arith.select %14, %12, %15 : vector<16x128xi1>, vector<16x128xf32>
    %cst_7 = arith.constant 0.000000e+00 : f32
    %17 = vector.broadcast %cst_7 : f32 to vector<16x128xf32>
    %18 = arith.maximumf %3, %17 : vector<16x128xf32>
    %19 = arith.mulf %3, %4 : vector<16x128xf32>
    %20 = arith.subf %18, %19 : vector<16x128xf32>
    %21 = math.log1p %8 : vector<16x128xf32>
    %22 = arith.addf %20, %21 : vector<16x128xf32>
    %c0_8 = arith.constant 0 : index
    %c0_9 = arith.constant 0 : index
    %23 = vector.load %arg5[%c0_8, %c0_9] : memref<8x128xf32, #tpu.memory_space<vmem>>, vector<8x128xf32>
    %24 = arith.mulf %16, %4 : vector<16x128xf32>
    %25 = vector.shape_cast %24 : vector<16x128xf32> to vector<2x8x128xf32>
    %cst_10 = arith.constant dense<0.000000e+00> : vector<8x128xf32>
    %26 = vector.multi_reduction <add>, %25, %cst_10 [0] : vector<2x8x128xf32> to vector<8x128xf32>
    %27 = arith.addf %23, %26 : vector<8x128xf32>
    %c0_11 = arith.constant 0 : index
    %c0_12 = arith.constant 0 : index
    %28 = vector.load %arg5[%c0_11, %c0_12] : memref<8x128xf32, #tpu.memory_space<vmem>>, vector<8x128xf32>
    tpu.vector_store %arg5[%c0_11, %c0_12], %27 {strides = array<i32>} : memref<8x128xf32, #tpu.memory_space<vmem>>, vector<8x128xf32>,
    %c0_13 = arith.constant 0 : index
    %c0_14 = arith.constant 0 : index
    %29 = vector.load %arg6[%c0_13, %c0_14] : memref<8x128xf32, #tpu.memory_space<vmem>>, vector<8x128xf32>
    %30 = arith.addf %16, %4 : vector<16x128xf32>
    %31 = vector.shape_cast %30 : vector<16x128xf32> to vector<2x8x128xf32>
    %cst_15 = arith.constant dense<0.000000e+00> : vector<8x128xf32>
    %32 = vector.multi_reduction <add>, %31, %cst_15 [0] : vector<2x8x128xf32> to vector<8x128xf32>
    %33 = arith.addf %29, %32 : vector<8x128xf32>
    %c0_16 = arith.constant 0 : index
    %c0_17 = arith.constant 0 : index
    %34 = vector.load %arg6[%c0_16, %c0_17] : memref<8x128xf32, #tpu.memory_space<vmem>>, vector<8x128xf32>
    tpu.vector_store %arg6[%c0_16, %c0_17], %33 {strides = array<i32>} : memref<8x128xf32, #tpu.memory_space<vmem>>, vector<8x128xf32>,
    %c0_18 = arith.constant 0 : index
    %c0_19 = arith.constant 0 : index
    %35 = vector.load %arg7[%c0_18, %c0_19] : memref<8x128xf32, #tpu.memory_space<vmem>>, vector<8x128xf32>
    %36 = vector.shape_cast %22 : vector<16x128xf32> to vector<2x8x128xf32>
    %cst_20 = arith.constant dense<0.000000e+00> : vector<8x128xf32>
    %37 = vector.multi_reduction <add>, %36, %cst_20 [0] : vector<2x8x128xf32> to vector<8x128xf32>
    %38 = arith.addf %35, %37 : vector<8x128xf32>
    %c0_21 = arith.constant 0 : index
    %c0_22 = arith.constant 0 : index
    %39 = vector.load %arg7[%c0_21, %c0_22] : memref<8x128xf32, #tpu.memory_space<vmem>>, vector<8x128xf32>
    tpu.vector_store %arg7[%c0_21, %c0_22], %38 {strides = array<i32>} : memref<8x128xf32, #tpu.memory_space<vmem>>, vector<8x128xf32>,
    %c0_i32_23 = arith.constant 0 : i32
    %40 = arith.cmpi eq, %arg1, %c0_i32_23 : i32
    %41 = arith.extui %40 : i1 to i32
    %c0_i32_24 = arith.constant 0 : i32
    %42 = arith.cmpi ne, %41, %c0_i32_24 : i32
    scf.if %42 {
      %c0_25 = arith.constant 0 : index
      %c0_26 = arith.constant 0 : index
      %43 = vector.load %arg5[%c0_25, %c0_26] : memref<8x128xf32, #tpu.memory_space<vmem>>, vector<8x128xf32>
      %44 = vector.shape_cast %43 : vector<8x128xf32> to vector<1x8x128xf32>
      %cst_27 = arith.constant dense<0.000000e+00> : vector<1xf32>
      %45 = vector.multi_reduction <add>, %44, %cst_27 [1, 2] : vector<1x8x128xf32> to vector<1xf32>
      %46 = vector.shape_cast %45 : vector<1xf32> to vector<1x1x1xf32>
      %47 = vector.extract %46[0, 0, 0] : f32 from vector<1x1x1xf32>
      %c0_28 = arith.constant 0 : index
      %c0_29 = arith.constant 0 : index
      %48 = memref.load %arg4[%c0_28, %c0_29] : memref<1x3xf32, #tpu.memory_space<smem>>
      memref.store %47, %arg4[%c0_28, %c0_29] : memref<1x3xf32, #tpu.memory_space<smem>>
      %c0_30 = arith.constant 0 : index
      %c0_31 = arith.constant 0 : index
      %49 = vector.load %arg6[%c0_30, %c0_31] : memref<8x128xf32, #tpu.memory_space<vmem>>, vector<8x128xf32>
      %50 = vector.shape_cast %49 : vector<8x128xf32> to vector<1x8x128xf32>
      %cst_32 = arith.constant dense<0.000000e+00> : vector<1xf32>
      %51 = vector.multi_reduction <add>, %50, %cst_32 [1, 2] : vector<1x8x128xf32> to vector<1xf32>
      %52 = vector.shape_cast %51 : vector<1xf32> to vector<1x1x1xf32>
      %53 = vector.extract %52[0, 0, 0] : f32 from vector<1x1x1xf32>
      %c0_33 = arith.constant 0 : index
      %c1 = arith.constant 1 : index
      %54 = memref.load %arg4[%c0_33, %c1] : memref<1x3xf32, #tpu.memory_space<smem>>
      memref.store %53, %arg4[%c0_33, %c1] : memref<1x3xf32, #tpu.memory_space<smem>>
      %c0_34 = arith.constant 0 : index
      %c0_35 = arith.constant 0 : index
      %55 = vector.load %arg7[%c0_34, %c0_35] : memref<8x128xf32, #tpu.memory_space<vmem>>, vector<8x128xf32>
      %56 = vector.shape_cast %55 : vector<8x128xf32> to vector<1x8x128xf32>
      %cst_36 = arith.constant dense<0.000000e+00> : vector<1xf32>
      %57 = vector.multi_reduction <add>, %56, %cst_36 [1, 2] : vector<1x8x128xf32> to vector<1xf32>
      %58 = vector.shape_cast %57 : vector<1xf32> to vector<1x1x1xf32>
      %59 = vector.extract %58[0, 0, 0] : f32 from vector<1x1x1xf32>
      %c0_37 = arith.constant 0 : index
      %c2 = arith.constant 2 : index
      %60 = memref.load %arg4[%c0_37, %c2] : memref<1x3xf32, #tpu.memory_space<smem>>
      memref.store %59, %arg4[%c0_37, %c2] : memref<1x3xf32, #tpu.memory_space<smem>>
    } else {
    }
    return
  }
  func.func @transform_0(%arg0: i32, %arg1: i32) -> (i32, i32) {
    %c1_i32 = arith.constant 1 : i32
    %0 = arith.muli %arg0, %c1_i32 : i32
    %1 = arith.addi %0, %arg1 : i32
    %c0_i32 = arith.constant 0 : i32
    %c0_i32_0 = arith.constant 0 : i32
    return %1, %c0_i32 : i32, i32
  }
  func.func @transform_1(%arg0: i32, %arg1: i32) -> (i32, i32) {
    %c1_i32 = arith.constant 1 : i32
    %0 = arith.muli %arg0, %c1_i32 : i32
    %1 = arith.addi %0, %arg1 : i32
    %c0_i32 = arith.constant 0 : i32
    %c0_i32_0 = arith.constant 0 : i32
    return %1, %c0_i32 : i32, i32
  }
  func.func @transform_2(%arg0: i32, %arg1: i32) -> (i32, i32) {
    %c0_i32 = arith.constant 0 : i32
    %c0_i32_0 = arith.constant 0 : i32
    return %arg0, %c0_i32 : i32, i32
  }
}

</mosaic_0001>

<llo_original>
// kernel: tpu_custom_call.1
$region0: #{tpu_custom_call.1}
  #allocation0 [shape = 'u32[]', space=smem, size = 0x4, offset = 0x4, fixed_abs, tag = 'smem constant byte address 0x4 - core index']
  #allocation1 [shape = 'u32[144,128]{1,0:T(1,128)}', space=vmem, size = 0x12000, scoped, tag = 'internal scratch']
  #allocation2 [shape = 'f32[8,128]{1,0:T(8,128)}', space=vmem, size = 0x1000, scoped, tag = 'scratch operand']
  #allocation3 [shape = 'f32[8,128]{1,0:T(8,128)}', space=vmem, size = 0x1000, scoped, tag = 'scratch operand']
  #allocation4 [shape = 'f32[8,128]{1,0:T(8,128)}', space=vmem, size = 0x1000, scoped, tag = 'scratch operand']
  %s0 = inlined_call_operand.hbm [shape: f32[16,128], index: 0, kind: input, shape index: {}]
  %s1 = inlined_call_operand.hbm [shape: f32[16,128], index: 1, kind: input, shape index: {}]
  %s2 = inlined_call_operand.hbm [shape: f32[1,3], index: 2, kind: output, shape index: {}]
  %s3 = sld [smem:[#allocation0]]
  $region34: #{tpu_custom_call.1} parent=0
    _
  %s5 = ssub.s32 1, %s3
  %s6 = scalar_select 0, %s5, %s3
  $region1: #{tpu_custom_call.1} parent=0
    #allocation5 [shape = 'u8[8192]{0}', space=vmem, size = 0x2000, scoped, tag = 'input window, operand 0, single buffered']
    #allocation6 [shape = 's32[1]{0}', space=sflag, size = 0x4, scoped, tag = 'scoped memory for tpu_custom_call.1']
    #allocation7 [shape = 's32[1]{0}', space=sflag, size = 0x4, scoped, tag = 'scoped memory for tpu_custom_call.1']
    #allocation8 [shape = 'u8[8192]{0}', space=vmem, size = 0x2000, scoped, tag = 'input window, operand 1, single buffered']
    #allocation9 [shape = 's32[1]{0}', space=sflag, size = 0x4, scoped, tag = 'scoped memory for tpu_custom_call.1']
    #allocation10 [shape = 'u8[512]{0}', space=smem, size = 0x200, scoped, tag = 'output window, operand 0, single buffered']
    %7 = vsyncpa [#allocation6], 0
    %8 = vsyncpa [#allocation9], 0
    %9 = vsyncpa [#allocation7], 0
    // Predicated region
    $region2: #{tpu_custom_call.1} parent=1 // pred_check
      _
    $region3: #{tpu_custom_call.1} parent=1 // pred_check_branch
      %11 = sbr.rel (0) target = $region5
    $region4: #{tpu_custom_call.1} parent=1 // pred_region
      %s12 = sadd.s32 0, 0
      %s13 = smul.u32 2, %s12
      %s15 = ssub.s32 256, 256
      %16 = vsyncadd [#allocation6], %s15
      %s17 = smul.addr %s13, 128
      %s18 = scalar_lea.hbm %s0, %s17
      %s19 = sshll.u32 [#allocation5], 4
      %s20 = int_to_ptr.vmem [resolvable:$true] %s19
      %25 = dma.hbm_to_vmem [thread:$0]  %s18, 256, %s20, [#allocation6], 128, 128, 8
    $region5: #{tpu_custom_call.1} parent=1 // pred_fallthru
      _
    // Predicated region
    $region6: #{tpu_custom_call.1} parent=1 // pred_check
      _
    $region7: #{tpu_custom_call.1} parent=1 // pred_check_branch
      %27 = sbr.rel (0) target = $region9
    $region8: #{tpu_custom_call.1} parent=1 // pred_region
      %s28 = sadd.s32 0, 0
      %s29 = smul.u32 2, %s28
      %s31 = ssub.s32 256, 256
      %32 = vsyncadd [#allocation9], %s31
      %s33 = smul.addr %s29, 128
      %s34 = scalar_lea.hbm %s1, %s33
      %s35 = sshll.u32 [#allocation8], 4
      %s36 = int_to_ptr.vmem [resolvable:$true] %s35
      %41 = dma.hbm_to_vmem [thread:$0]  %s34, 256, %s36, [#allocation9], 128, 128, 8
    $region9: #{tpu_custom_call.1} parent=1 // pred_fallthru
      _
    // Predicated region
    $region10: #{tpu_custom_call.1} parent=1 // pred_check
      _
    $region11: #{tpu_custom_call.1} parent=1 // pred_check_branch
      %43 = sbr.rel (0) target = $region13
    $region12: #{tpu_custom_call.1} parent=1 // pred_region
      %44 = dma.done [#allocation6], 256
    $region13: #{tpu_custom_call.1} parent=1 // pred_fallthru
      _
    // Predicated region
    $region14: #{tpu_custom_call.1} parent=1 // pred_check
      _
    $region15: #{tpu_custom_call.1} parent=1 // pred_check_branch
      %46 = sbr.rel (0) target = $region17
    $region16: #{tpu_custom_call.1} parent=1 // pred_region
      %47 = dma.done [#allocation9], 256
    $region17: #{tpu_custom_call.1} parent=1 // pred_fallthru
      _
    %s48 = sadd.s32 0, 0
    %s49 = smul.u32 2, %s48
    %s50 = sadd.s32 0, 0
    %s51 = smul.u32 2, %s50
    %p52 = scmp.eq.s32.totalorder 0, 0
    // Predicated region
    $region18: #{tpu_custom_call.1} parent=1 // pred_check
      %p53 = pneg %p52
    $region19: #{tpu_custom_call.1} parent=1 // pred_check_branch
      %55 = sbr.rel (%p53) target = $region21
    $region20: #{tpu_custom_call.1} parent=1 // pred_region
      %56 = vst [vmem:[#allocation2] sm:$0xff] 0.0
      %57 = vst [vmem:[#allocation3] sm:$0xff] 0.0
      %58 = vst [vmem:[#allocation4] sm:$0xff] 0.0
    $region21: #{tpu_custom_call.1} parent=1 // pred_fallthru
      _
    %v59 = vld [vmem:[#allocation5] sm:$0xff]
    %v60 = vld [vmem:[#allocation5 + $0x8] sm:$0xff]
    %v61 = vld [vmem:[#allocation8] sm:$0xff]
    %v62 = vld [vmem:[#allocation8 + $0x8] sm:$0xff]
    %v63 = vand.u32 2147483647, %v59
    %v64 = vand.u32 2147483647, %v60
    %v65 = vsub.f32 0.0, %v63
    %v66 = vsub.f32 0.0, %v64
    %v67 = vmul.f32 %v65, 1.442695
    %v68 = vpow.pop %v67
    %v69 = vmul.f32 %v66, 1.442695
    %v70 = vpow.pop %v69
    %v71 = vadd.f32 %v68, 1.0
    %v72 = vadd.f32 %v70, 1.0
    %v73 = vrcp.pop %v71
    %v74 = vmul.f32 1.0, %v73
    %v75 = vrcp.pop %v72
    %v76 = vmul.f32 1.0, %v75
    %vm77 = vcmp.ge.f32.partialorder %v59, 0.0
    %vm78 = vcmp.ge.f32.partialorder %v60, 0.0
    %v79 = vmul.f32 %v68, %v74
    %v80 = vmul.f32 %v70, %v76
    %v81 = vsel %vm77, %v74, %v79
    %v82 = vsel %vm78, %v76, %v80
    %v83 = vmax.f32 %v59, 0.0
    %v84 = vmax.f32 %v60, 0.0
    %v85 = vmul.f32 %v59, %v61
    %v86 = vmul.f32 %v60, %v62
    %v87 = vsub.f32 %v83, %v85
    %v88 = vsub.f32 %v84, %v86
    %v89 = vadd.f32 %v68, 1.0
    %v90 = vlog2.pop %v89
    %v91 = vmul.f32 %v90, 0.6931472
    %v92 = vmul.f32 -0.5, %v68
    %v93 = vadd.f32 %v92, 1.0
    %v94 = vmul.f32 %v93, %v68
    %v95 = vand.u32 2147483647, %v68
    %vm96 = vcmp.lt.f32.partialorder %v95, 0.0004427343
    %v97 = vsel %vm96, %v94, %v91
    %v98 = vadd.f32 %v70, 1.0
    %v99 = vlog2.pop %v98
    %v100 = vmul.f32 %v99, 0.6931472
    %v101 = vmul.f32 -0.5, %v70
    %v102 = vadd.f32 %v101, 1.0
    %v103 = vmul.f32 %v102, %v70
    %v104 = vand.u32 2147483647, %v70
    %vm105 = vcmp.lt.f32.partialorder %v104, 0.0004427343
    %v106 = vsel %vm105, %v103, %v100
    %v107 = vadd.f32 %v87, %v97
    %v108 = vadd.f32 %v88, %v106
    %v109 = vld [vmem:[#allocation2] sm:$0xff]
    %v110 = vmul.f32 %v81, %v61
    %v111 = vmul.f32 %v82, %v62
    %v112 = vadd.f32 %v110, %v111
    %v113 = vadd.f32 %v109, %v112
    %114 = vst [vmem:[#allocation2] sm:$0xff] %v113
    %v115 = vld [vmem:[#allocation3] sm:$0xff]
    %v116 = vadd.f32 %v81, %v61
    %v117 = vadd.f32 %v82, %v62
    %v118 = vadd.f32 %v116, %v117
    %v119 = vadd.f32 %v115, %v118
    %120 = vst [vmem:[#allocation3] sm:$0xff] %v119
    %v121 = vld [vmem:[#allocation4] sm:$0xff]
    %v122 = vadd.f32 %v107, %v108
    %v123 = vadd.f32 %v121, %v122
    %124 = vst [vmem:[#allocation4] sm:$0xff] %v123
    // Predicated region
    $region22: #{tpu_custom_call.1} parent=1 // pred_check
      %p125 = pneg %p52
    $region23: #{tpu_custom_call.1} parent=1 // pred_check_branch
      %127 = sbr.rel (%p125) target = $region25
    $region24: #{tpu_custom_call.1} parent=1 // pred_region
      %v128 = vld [vmem:[#allocation2] sm:$0xff]
      %129 = vadd.xlane.f32.xlu0 %v128
      %v130 = vpop.xlane.xlu0 %129
      %v131 = vrot.slane %v130, 4
      %v132 = vadd.f32 %v130, %v131
      %v133 = vrot.slane %v132, 2
      %v134 = vadd.f32 %v132, %v133
      %v135 = vrot.slane %v134, 1
      %v136 = vadd.f32 %v134, %v135
      %s137 = vtos %v136
      %s138 = scalar_lea.smem [#allocation10], 0
      %139 = sst [smem:[%s138]] %s137
      %v140 = vld [vmem:[#allocation3] sm:$0xff]
      %141 = vadd.xlane.f32.xlu0 %v140
      %v142 = vpop.xlane.xlu0 %141
      %v143 = vrot.slane %v142, 4
      %v144 = vadd.f32 %v142, %v143
      %v145 = vrot.slane %v144, 2
      %v146 = vadd.f32 %v144, %v145
      %v147 = vrot.slane %v146, 1
      %v148 = vadd.f32 %v146, %v147
      %s149 = vtos %v148
      %s150 = scalar_lea.smem [#allocation10], 1
      %151 = sst [smem:[%s150]] %s149
      %v152 = vld [vmem:[#allocation4] sm:$0xff]
      %153 = vadd.xlane.f32.xlu0 %v152
      %v154 = vpop.xlane.xlu0 %153
      %v155 = vrot.slane %v154, 4
      %v156 = vadd.f32 %v154, %v155
      %v157 = vrot.slane %v156, 2
      %v158 = vadd.f32 %v156, %v157
      %v159 = vrot.slane %v158, 1
      %v160 = vadd.f32 %v158, %v159
      %s161 = vtos %v160
      %s162 = scalar_lea.smem [#allocation10], 2
      %163 = sst [smem:[%s162]] %s161
    $region25: #{tpu_custom_call.1} parent=1 // pred_fallthru
      _
    // Predicated region
    $region26: #{tpu_custom_call.1} parent=1 // pred_check
      _
    $region27: #{tpu_custom_call.1} parent=1 // pred_check_branch
      %165 = sbr.rel (0) target = $region29
    $region28: #{tpu_custom_call.1} parent=1 // pred_region
      %s167 = ssub.s32 16, 16
      %168 = vsyncadd [#allocation7], %s167
      %171 = dma.smem_to_hbm [#allocation10], 16, %s2, [#allocation7]
    $region29: #{tpu_custom_call.1} parent=1 // pred_fallthru
      _
    // Predicated region
    $region30: #{tpu_custom_call.1} parent=1 // pred_check
      _
    $region31: #{tpu_custom_call.1} parent=1 // pred_check_branch
      %173 = sbr.rel (0) target = $region33
    $region32: #{tpu_custom_call.1} parent=1 // pred_region
      %174 = dma.done [#allocation7], 16
    $region33: #{tpu_custom_call.1} parent=1 // pred_fallthru
      _
    %175 = sfence
    %176 = vsyncpa [#allocation6], 1
    %177 = vsyncpa [#allocation9], 1
    %178 = vsyncpa [#allocation7], 1

</llo_original>
